<compile_context>
chip_gen: v7x
topology: tpu7x:2x2x1
jax: 0.10.0
libtpu: 0.0.40
codegen_flags: <defaults>
</compile_context>

<pallas_src>
import jax
import jax.numpy as jnp
from jax.experimental import pallas as pl
from jax.experimental.pallas import tpu as pltpu


def _residual_layer_kernel(x_ref, w1_ref, b1_ref, w2_ref, b2_ref, o_ref):
    """One batch tile: out = x + (relu(relu(x) @ W1 + b1) @ W2 + b2)."""
    x = x_ref[...]                                    # [TB, D], storage dtype (f32)

    # y = dropout(activation_fn(x)); dropout(p=0) is identity in eval.
    # Cast only the MXU operand to the (bf16) weight dtype; accumulate in f32.
    y = jnp.maximum(x, 0).astype(w1_ref.dtype)

    # dense: Linear(n_in, n_out) + activation
    h = jnp.dot(y, w1_ref[...], preferred_element_type=jnp.float32)
    h = jnp.maximum(h + b1_ref[...].astype(jnp.float32), 0.0)

    # residual: Linear(n_out, n_out), no activation
    r = jnp.dot(h.astype(w2_ref.dtype), w2_ref[...],
                preferred_element_type=jnp.float32)
    r = r + b2_ref[...].astype(jnp.float32)

    # final residual add in f32
    o_ref[...] = (x.astype(jnp.float32) + r).astype(o_ref.dtype)


def _round_up(n, m):
    return ((n + m - 1) // m) * m


def _vmem_limit_bytes():
    # Budget ~75% of physical VMEM (v5e/v6e: 128 MiB -> 96 MiB, v7x: 64 MiB -> 48 MiB),
    # leaving headroom for compiler scratch and the double-buffered x/out tiles.
    try:
        cap = int(pltpu.get_tpu_info().vmem_capacity_bytes)
    except Exception:
        cap = 64 << 20  # conservative fallback (v7x per-TC physical)
    return (cap * 3) // 4


def residual_layer(x, w1, b1, w2, b2, *, block_b=None, matmul_dtype=jnp.bfloat16):
    """x: [B, D], w1: [D, D], b1: [1, D], w2: [D, D], b2: [1, D] -> [B, D]."""
    B, D = x.shape
    assert w1.shape == (D, D) and w2.shape == (D, D)
    assert b1.shape == (1, D) and b2.shape == (1, D)

    # bf16 weights: halves HBM bytes and VMEM residency; matmul accumulates in f32.
    w1 = w1.astype(matmul_dtype)
    w2 = w2.astype(matmul_dtype)

    # Batch tile: 256/512-multiples feed the 256x256 MXU (v6e/v7x) when B is large enough;
    # otherwise just sublane-round the whole batch. Pad rows are sliced off below.
    if block_b is None:
        if B >= 512:
            block_b = 512
        elif B >= 256:
            block_b = 256
        else:
            block_b = _round_up(B, 8)
    Bp = _round_up(B, block_b)
    if Bp != B:
        x = jnp.pad(x, ((0, Bp - B), (0, 0)))

    grid = (Bp // block_b,)

    out = pl.pallas_call(
        _residual_layer_kernel,
        out_shape=jax.ShapeDtypeStruct((Bp, D), x.dtype),
        grid=grid,
        in_specs=[
            pl.BlockSpec((block_b, D), lambda i: (i, 0)),  # x tile streams over the grid
            pl.BlockSpec((D, D), lambda i: (0, 0)),        # W1: VMEM-resident
            pl.BlockSpec((1, D), lambda i: (0, 0)),        # b1: VMEM-resident
            pl.BlockSpec((D, D), lambda i: (0, 0)),        # W2: VMEM-resident
            pl.BlockSpec((1, D), lambda i: (0, 0)),        # b2: VMEM-resident
        ],
        out_specs=pl.BlockSpec((block_b, D), lambda i: (i, 0)),
        compiler_params=pltpu.CompilerParams(
            dimension_semantics=("parallel",),
            vmem_limit_bytes=_vmem_limit_bytes(),
        ),
    )(x, w1, b1, w2, b2)

    return out[:B] if Bp != B else out


def _reference(x, w1, b1, w2, b2, matmul_dtype=jnp.float32):
    y = jnp.maximum(x, 0.0).astype(matmul_dtype)
    h = jnp.dot(y, w1.astype(matmul_dtype), preferred_element_type=jnp.float32) + b1
    h = jnp.maximum(h, 0.0)
    r = jnp.dot(h.astype(matmul_dtype), w2.astype(matmul_dtype),
                preferred_element_type=jnp.float32) + b2
    return x + r


if __name__ == "__main__":
    key = jax.random.PRNGKey(0)
    B, D = 8, 128  # batch, n_in == n_out (required for the residual add)

    k_x, k_w1, k_b1, k_w2, k_b2 = jax.random.split(key, 5)
    x = jax.random.normal(k_x, (B, D), dtype=jnp.float32)
    # Deterministic parameter init (synthetic; module __init__ gives shapes only).
    w1 = jax.random.normal(k_w1, (D, D), dtype=jnp.float32) * (1.0 / jnp.sqrt(D))
    b1 = jax.random.normal(k_b1, (1, D), dtype=jnp.float32) * 0.01
    w2 = jax.random.normal(k_w2, (D, D), dtype=jnp.float32) * (1.0 / jnp.sqrt(D))
    b2 = jax.random.normal(k_b2, (1, D), dtype=jnp.float32) * 0.01

    out = residual_layer(x, w1, b1, w2, b2)
    jax.block_until_ready(out)
    assert out.shape == (B, D)

    # Reference mirroring the kernel's precision (bf16 MXU operands, f32 accumulate).
    ref_bf16 = _reference(x, w1, b1, w2, b2, matmul_dtype=jnp.bfloat16)
    assert jnp.allclose(out, ref_bf16, atol=2e-3, rtol=2e-3), "mismatch vs bf16 reference"

    # Full-f32 module semantics (looser tolerance only due to bf16 matmul operands).
    ref_f32 = _reference(x, w1, b1, w2, b2, matmul_dtype=jnp.float32)
    assert jnp.allclose(out, ref_f32, atol=1e-1, rtol=1e-1), "mismatch vs f32 reference"

    print("KERNEL_OK")
</pallas_src>

<mosaic_0001>
module attributes {stable_mosaic.version = 11 : i64} {
  func.func @_residual_layer_kernel(%arg0: i32, %arg1: memref<8x128xf32, #tpu.memory_space<vmem>>, %arg2: memref<128x128xbf16, #tpu.memory_space<vmem>>, %arg3: memref<1x128xf32, #tpu.memory_space<vmem>>, %arg4: memref<128x128xbf16, #tpu.memory_space<vmem>>, %arg5: memref<1x128xf32, #tpu.memory_space<vmem>>, %arg6: memref<8x128xf32, #tpu.memory_space<vmem>>) attributes {dimension_semantics = [#tpu.dimension_semantics<parallel>], iteration_bounds = array<i64: 1>, scalar_prefetch = 0 : i64, scratch_operands = 0 : i64, tpu.core_type = #tpu.core_type<tc>, window_params = [{transform_indices = @transform_0, window_bounds = array<i64: 8, 128>}, {pipeline_mode = #tpu.pipeline_mode<synchronous>, transform_indices = @transform_1, window_bounds = array<i64: 128, 128>}, {pipeline_mode = #tpu.pipeline_mode<synchronous>, transform_indices = @transform_2, window_bounds = array<i64: 1, 128>}, {pipeline_mode = #tpu.pipeline_mode<synchronous>, transform_indices = @transform_3, window_bounds = array<i64: 128, 128>}, {pipeline_mode = #tpu.pipeline_mode<synchronous>, transform_indices = @transform_4, window_bounds = array<i64: 1, 128>}, {transform_indices = @transform_5, window_bounds = array<i64: 8, 128>}]} {
    %c0 = arith.constant 0 : index
    %c0_0 = arith.constant 0 : index
    %0 = vector.load %arg1[%c0, %c0_0] : memref<8x128xf32, #tpu.memory_space<vmem>>, vector<8x128xf32>
    %cst = arith.constant 0.000000e+00 : f32
    %1 = vector.broadcast %cst : f32 to vector<8x128xf32>
    %2 = arith.maximumf %0, %1 : vector<8x128xf32>
    %3 = arith.truncf %2 : vector<8x128xf32> to vector<8x128xbf16>
    %c0_1 = arith.constant 0 : index
    %c0_2 = arith.constant 0 : index
    %4 = vector.load %arg2[%c0_1, %c0_2] : memref<128x128xbf16, #tpu.memory_space<vmem>>, vector<128x128xbf16>
    %cst_3 = arith.constant dense<0.000000e+00> : vector<8x128xf32>
    %5 = tpu.matmul %3, %4, %cst_3 {dimension_numbers = #tpu.dot_dimension_numbers<[1], [0], [0], [1], [0, 0, 1, 1], [], []>} : vector<8x128xbf16>, vector<128x128xbf16>, vector<8x128xf32> -> vector<8x128xf32>
    %c0_4 = arith.constant 0 : index
    %c0_5 = arith.constant 0 : index
    %6 = vector.load %arg3[%c0_4, %c0_5] : memref<1x128xf32, #tpu.memory_space<vmem>>, vector<1x128xf32>
    %7 = vector.broadcast %6 : vector<1x128xf32> to vector<8x128xf32>
    %8 = arith.addf %5, %7 : vector<8x128xf32>
    %cst_6 = arith.constant 0.000000e+00 : f32
    %9 = vector.broadcast %cst_6 : f32 to vector<8x128xf32>
    %10 = arith.maximumf %8, %9 : vector<8x128xf32>
    %11 = arith.truncf %10 : vector<8x128xf32> to vector<8x128xbf16>
    %c0_7 = arith.constant 0 : index
    %c0_8 = arith.constant 0 : index
    %12 = vector.load %arg4[%c0_7, %c0_8] : memref<128x128xbf16, #tpu.memory_space<vmem>>, vector<128x128xbf16>
    %cst_9 = arith.constant dense<0.000000e+00> : vector<8x128xf32>
    %13 = tpu.matmul %11, %12, %cst_9 {dimension_numbers = #tpu.dot_dimension_numbers<[1], [0], [0], [1], [0, 0, 1, 1], [], []>} : vector<8x128xbf16>, vector<128x128xbf16>, vector<8x128xf32> -> vector<8x128xf32>
    %c0_10 = arith.constant 0 : index
    %c0_11 = arith.constant 0 : index
    %14 = vector.load %arg5[%c0_10, %c0_11] : memref<1x128xf32, #tpu.memory_space<vmem>>, vector<1x128xf32>
    %15 = vector.broadcast %14 : vector<1x128xf32> to vector<8x128xf32>
    %16 = arith.addf %13, %15 : vector<8x128xf32>
    %17 = arith.addf %0, %16 : vector<8x128xf32>
    %c0_12 = arith.constant 0 : index
    %c0_13 = arith.constant 0 : index
    %18 = vector.load %arg6[%c0_12, %c0_13] : memref<8x128xf32, #tpu.memory_space<vmem>>, vector<8x128xf32>
    tpu.vector_store %arg6[%c0_12, %c0_13], %17 {strides = array<i32>} : memref<8x128xf32, #tpu.memory_space<vmem>>, vector<8x128xf32>,
    return
  }
  func.func @transform_0(%arg0: i32) -> (i32, i32) {
    %c0_i32 = arith.constant 0 : i32
    %c0_i32_0 = arith.constant 0 : i32
    return %arg0, %c0_i32 : i32, i32
  }
  func.func @transform_1(%arg0: i32) -> (i32, i32) {
    %c0_i32 = arith.constant 0 : i32
    %c0_i32_0 = arith.constant 0 : i32
    %c0_i32_1 = arith.constant 0 : i32
    return %c0_i32, %c0_i32_0 : i32, i32
  }
  func.func @transform_2(%arg0: i32) -> (i32, i32) {
    %c0_i32 = arith.constant 0 : i32
    %c0_i32_0 = arith.constant 0 : i32
    %c0_i32_1 = arith.constant 0 : i32
    return %c0_i32, %c0_i32_0 : i32, i32
  }
  func.func @transform_3(%arg0: i32) -> (i32, i32) {
    %c0_i32 = arith.constant 0 : i32
    %c0_i32_0 = arith.constant 0 : i32
    %c0_i32_1 = arith.constant 0 : i32
    return %c0_i32, %c0_i32_0 : i32, i32
  }
  func.func @transform_4(%arg0: i32) -> (i32, i32) {
    %c0_i32 = arith.constant 0 : i32
    %c0_i32_0 = arith.constant 0 : i32
    %c0_i32_1 = arith.constant 0 : i32
    return %c0_i32, %c0_i32_0 : i32, i32
  }
  func.func @transform_5(%arg0: i32) -> (i32, i32) {
    %c0_i32 = arith.constant 0 : i32
    %c0_i32_0 = arith.constant 0 : i32
    return %arg0, %c0_i32 : i32, i32
  }
}

</mosaic_0001>

<llo_original>
// kernel: tpu_custom_call.1
$region0: #{tpu_custom_call.1}
  #allocation0 [shape = 'u32[]', space=smem, size = 0x4, offset = 0x4, fixed_abs, tag = 'smem constant byte address 0x4 - core index']
  #allocation1 [shape = 'u32[144,128]{1,0:T(1,128)}', space=vmem, size = 0x12000, scoped, tag = 'internal scratch']
  %s0 = inlined_call_operand.hbm [shape: f32[8,128], index: 0, kind: input, shape index: {}]
  %s1 = inlined_call_operand.hbm [shape: bf16[128,128], index: 1, kind: input, shape index: {}]
  %s2 = inlined_call_operand.vmem [shape: f32[1,128], index: 2, kind: input, shape index: {}]
  %s3 = inlined_call_operand.hbm [shape: bf16[128,128], index: 3, kind: input, shape index: {}]
  %s4 = inlined_call_operand.vmem [shape: f32[1,128], index: 4, kind: input, shape index: {}]
  %s5 = inlined_call_operand.hbm [shape: f32[8,128], index: 5, kind: output, shape index: {}]
  %s6 = sld [smem:[#allocation0]]
  $region42: #{tpu_custom_call.1} parent=0
    _
  %s8 = ssub.s32 1, %s6
  %s9 = scalar_select 0, %s8, %s6
  $region1: #{tpu_custom_call.1} parent=0
    #allocation2 [shape = 'u8[4096]{0}', space=vmem, size = 0x1000, scoped, tag = 'input window, operand 0, single buffered']
    #allocation3 [shape = 's32[1]{0}', space=sflag, size = 0x4, scoped, tag = 'scoped memory for tpu_custom_call.1']
    #allocation4 [shape = 's32[1]{0}', space=sflag, size = 0x4, scoped, tag = 'scoped memory for tpu_custom_call.1']
    #allocation5 [shape = 'u8[32768]{0}', space=vmem, size = 0x8000, scoped, tag = 'input window, operand 1, single buffered']
    #allocation6 [shape = 's32[1]{0}', space=sflag, size = 0x4, scoped, tag = 'scoped memory for tpu_custom_call.1']
    #allocation7 [shape = 'u8[32768]{0}', space=vmem, size = 0x8000, scoped, tag = 'input window, operand 3, single buffered']
    #allocation8 [shape = 'u8[4096]{0}', space=vmem, size = 0x1000, scoped, tag = 'output window, operand 0, single buffered']
    %10 = vsyncpa [#allocation3], 0
    %11 = vsyncpa [#allocation6], 0
    %12 = vsyncpa [#allocation4], 0
    // Predicated region
    $region2: #{tpu_custom_call.1} parent=1 // pred_check
      _
    $region3: #{tpu_custom_call.1} parent=1 // pred_check_branch
      %14 = sbr.rel (0) target = $region5
    $region4: #{tpu_custom_call.1} parent=1 // pred_region
      %s16 = ssub.s32 128, 128
      %17 = vsyncadd [#allocation3], %s16
      %s19 = sshll.u32 [#allocation2], 4
      %s20 = int_to_ptr.vmem [resolvable:$true] %s19
      %22 = dma.hbm_to_vmem [thread:$0]  %s0, 128, %s20, [#allocation3]
    $region5: #{tpu_custom_call.1} parent=1 // pred_fallthru
      _
    // Predicated region
    $region6: #{tpu_custom_call.1} parent=1 // pred_check
      _
    $region7: #{tpu_custom_call.1} parent=1 // pred_check_branch
      %24 = sbr.rel (0) target = $region9
    $region8: #{tpu_custom_call.1} parent=1 // pred_region
      %s26 = ssub.s32 1024, 1024
      %27 = vsyncadd [#allocation6], %s26
      %s28 = sshll.u32 [#allocation5], 4
      %s29 = int_to_ptr.vmem [resolvable:$true] %s28
      %34 = dma.hbm_to_vmem [thread:$0]  %s1, 1024, %s29, [#allocation6], 64, 64, 4
    $region9: #{tpu_custom_call.1} parent=1 // pred_fallthru
      _
    // Predicated region
    $region10: #{tpu_custom_call.1} parent=1 // pred_check
      _
    $region11: #{tpu_custom_call.1} parent=1 // pred_check_branch
      %36 = sbr.rel (0) target = $region13
    $region12: #{tpu_custom_call.1} parent=1 // pred_region
      _
    $region13: #{tpu_custom_call.1} parent=1 // pred_fallthru
      _
    // Predicated region
    $region14: #{tpu_custom_call.1} parent=1 // pred_check
      _
    $region15: #{tpu_custom_call.1} parent=1 // pred_check_branch
      %38 = sbr.rel (0) target = $region17
    $region16: #{tpu_custom_call.1} parent=1 // pred_region
      %s40 = ssub.s32 1024, 1024
      %41 = vsyncadd [#allocation6], %s40
      %s42 = sshll.u32 [#allocation7], 4
      %s43 = int_to_ptr.vmem [resolvable:$true] %s42
      %48 = dma.hbm_to_vmem [thread:$0]  %s3, 1024, %s43, [#allocation6], 64, 64, 4
    $region17: #{tpu_custom_call.1} parent=1 // pred_fallthru
      _
    // Predicated region
    $region18: #{tpu_custom_call.1} parent=1 // pred_check
      _
    $region19: #{tpu_custom_call.1} parent=1 // pred_check_branch
      %50 = sbr.rel (0) target = $region21
    $region20: #{tpu_custom_call.1} parent=1 // pred_region
      _
    $region21: #{tpu_custom_call.1} parent=1 // pred_fallthru
      _
    // Predicated region
    $region22: #{tpu_custom_call.1} parent=1 // pred_check
      _
    $region23: #{tpu_custom_call.1} parent=1 // pred_check_branch
      %52 = sbr.rel (0) target = $region25
    $region24: #{tpu_custom_call.1} parent=1 // pred_region
      %53 = dma.done [#allocation3], 128
    $region25: #{tpu_custom_call.1} parent=1 // pred_fallthru
      _
    // Predicated region
    $region26: #{tpu_custom_call.1} parent=1 // pred_check
      _
    $region27: #{tpu_custom_call.1} parent=1 // pred_check_branch
      %55 = sbr.rel (0) target = $region29
    $region28: #{tpu_custom_call.1} parent=1 // pred_region
      %56 = dma.done [#allocation6], 1024
    $region29: #{tpu_custom_call.1} parent=1 // pred_fallthru
      _
    // Predicated region
    $region30: #{tpu_custom_call.1} parent=1 // pred_check
      _
    $region31: #{tpu_custom_call.1} parent=1 // pred_check_branch
      %58 = sbr.rel (0) target = $region33
    $region32: #{tpu_custom_call.1} parent=1 // pred_region
      %59 = dma.done [#allocation6], 1024
    $region33: #{tpu_custom_call.1} parent=1 // pred_fallthru
      _
    %v61 = vld [vmem:[#allocation2] sm:$0xff]
    %v62 = vmax.f32 %v61, 0.0
    %v63 = vpack.c.bf16 %v62, %v62
    %v64 = vld [vmem:[#allocation5] sm:$0xf]
    %v65 = vld [vmem:[#allocation5 + $0x4] sm:$0xf]
    %v66 = vld [vmem:[#allocation5 + $0x8] sm:$0xf]
    %v67 = vld [vmem:[#allocation5 + $0xc] sm:$0xf]
    %v68 = vld [vmem:[#allocation5 + $0x10] sm:$0xf]
    %v69 = vld [vmem:[#allocation5 + $0x14] sm:$0xf]
    %v70 = vld [vmem:[#allocation5 + $0x18] sm:$0xf]
    %v71 = vld [vmem:[#allocation5 + $0x1c] sm:$0xf]
    %v72 = vld [vmem:[#allocation5 + $0x20] sm:$0xf]
    %v73 = vld [vmem:[#allocation5 + $0x24] sm:$0xf]
    %v74 = vld [vmem:[#allocation5 + $0x28] sm:$0xf]
    %v75 = vld [vmem:[#allocation5 + $0x2c] sm:$0xf]
    %v76 = vld [vmem:[#allocation5 + $0x30] sm:$0xf]
    %v77 = vld [vmem:[#allocation5 + $0x34] sm:$0xf]
    %v78 = vld [vmem:[#allocation5 + $0x38] sm:$0xf]
    %v79 = vld [vmem:[#allocation5 + $0x3c] sm:$0xf]
    %v80 = vld [vmem:[%s2] sm:$0x1]
    %v82 = vlaneseq
    %v83 = vshrl.u32 %v82, 7
    %v84 = vsub.s32 0, %v83
    %v85 = vrot.slane %v80, %v84
    %v103 = vunpack.c.l.b16 %v64
    %v104 = vunpack.c.l.b16 %v65
    %v105 = vunpack.c.l.b16 %v66
    %v106 = vunpack.c.l.b16 %v67
    %v107 = vunpack.c.l.b16 %v68
    %v108 = vunpack.c.l.b16 %v69
    %v109 = vunpack.c.l.b16 %v70
    %v110 = vunpack.c.l.b16 %v71
    %v111 = vunpack.c.l.b16 %v72
    %v112 = vunpack.c.l.b16 %v73
    %v113 = vunpack.c.l.b16 %v74
    %v114 = vunpack.c.l.b16 %v75
    %v115 = vunpack.c.l.b16 %v76
    %v116 = vunpack.c.l.b16 %v77
    %v117 = vunpack.c.l.b16 %v78
    %v118 = vunpack.c.l.b16 %v79
    %v119 = vpack.c.b16 %v104, %v103
    %v120 = vpack.c.b16 %v106, %v105
    %v121 = vpack.c.b16 %v108, %v107
    %v122 = vpack.c.b16 %v110, %v109
    %v123 = vpack.c.b16 %v112, %v111
    %v124 = vpack.c.b16 %v114, %v113
    %v125 = vpack.c.b16 %v116, %v115
    %v126 = vpack.c.b16 %v118, %v117
    %135 = vmatprep.subr.bf16.mxu0 0
    %136 = vmatpush1.bf16.msra.mxu0 %v119
    %137 = vmatprep.subr.bf16.mxu0 0
    %138 = vmatpush1.bf16.msra.mxu0 %v120
    %139 = vmatprep.subr.bf16.mxu0 0
    %140 = vmatpush1.bf16.msra.mxu0 %v121
    %141 = vmatprep.subr.bf16.mxu0 0
    %142 = vmatpush1.bf16.msra.mxu0 %v122
    %143 = vmatprep.subr.bf16.mxu0 0
    %144 = vmatpush1.bf16.msra.mxu0 %v123
    %145 = vmatprep.subr.bf16.mxu0 0
    %146 = vmatpush1.bf16.msra.mxu0 %v124
    %147 = vmatprep.subr.bf16.mxu0 0
    %148 = vmatpush1.bf16.msra.mxu0 %v125
    %149 = vmatprep.subr.bf16.mxu0 0
    %150 = vmatpush1.bf16.msra.mxu0 %v126
    %151 = vmatprep.subr.bf16.mxu0 0
    %152 = vmatpush1.bf16.msra.mxu0 0
    %153 = vmatprep.subr.bf16.mxu0 0
    %154 = vmatpush1.bf16.msra.mxu0 0
    %155 = vmatprep.subr.bf16.mxu0 0
    %156 = vmatpush1.bf16.msra.mxu0 0
    %157 = vmatprep.subr.bf16.mxu0 0
    %158 = vmatpush1.bf16.msra.mxu0 0
    %159 = vmatprep.subr.bf16.mxu0 0
    %160 = vmatpush1.bf16.msra.mxu0 0
    %161 = vmatprep.subr.bf16.mxu0 0
    %162 = vmatpush1.bf16.msra.mxu0 0
    %163 = vmatprep.subr.bf16.mxu0 0
    %164 = vmatpush1.bf16.msra.mxu0 0
    %165 = vmatprep.subr.bf16.mxu0 0
    %166 = vmatpush1.bf16.msra.mxu0 0
    %167 = vmatprep.mubr.bf16.mxu0 0
    %168 = vmatmul.mubr.bf16.gmra.mrb[0].mxu0 %v63
    %v169 = vpop.f32.mrb[0].mxu0
    %v170 = vadd.f32 %v85, %v169
    %v171 = vpop.f32.mrb[0].mxu0
    %v172 = vpop.f32.mrb[0].mxu0
    %v173 = vpop.f32.mrb[0].mxu0
    %174 = vdwg.mxu0
    %v175 = vmax.f32 %v170, 0.0
    %v176 = vpack.c.bf16 %v175, %v175
    %v177 = vld [vmem:[#allocation7] sm:$0xf]
    %v178 = vld [vmem:[#allocation7 + $0x4] sm:$0xf]
    %v179 = vld [vmem:[#allocation7 + $0x8] sm:$0xf]
    %v180 = vld [vmem:[#allocation7 + $0xc] sm:$0xf]
    %v181 = vld [vmem:[#allocation7 + $0x10] sm:$0xf]
    %v182 = vld [vmem:[#allocation7 + $0x14] sm:$0xf]
    %v183 = vld [vmem:[#allocation7 + $0x18] sm:$0xf]
    %v184 = vld [vmem:[#allocation7 + $0x1c] sm:$0xf]
    %v185 = vld [vmem:[#allocation7 + $0x20] sm:$0xf]
    %v186 = vld [vmem:[#allocation7 + $0x24] sm:$0xf]
    %v187 = vld [vmem:[#allocation7 + $0x28] sm:$0xf]
    %v188 = vld [vmem:[#allocation7 + $0x2c] sm:$0xf]
    %v189 = vld [vmem:[#allocation7 + $0x30] sm:$0xf]
    %v190 = vld [vmem:[#allocation7 + $0x34] sm:$0xf]
    %v191 = vld [vmem:[#allocation7 + $0x38] sm:$0xf]
    %v192 = vld [vmem:[#allocation7 + $0x3c] sm:$0xf]
    %v193 = vld [vmem:[%s4] sm:$0x1]
    %v195 = vlaneseq
    %v196 = vshrl.u32 %v195, 7
    %v197 = vsub.s32 0, %v196
    %v198 = vrot.slane %v193, %v197
    %v216 = vunpack.c.l.b16 %v177
    %v217 = vunpack.c.l.b16 %v178
    %v218 = vunpack.c.l.b16 %v179
    %v219 = vunpack.c.l.b16 %v180
    %v220 = vunpack.c.l.b16 %v181
    %v221 = vunpack.c.l.b16 %v182
    %v222 = vunpack.c.l.b16 %v183
    %v223 = vunpack.c.l.b16 %v184
    %v224 = vunpack.c.l.b16 %v185
    %v225 = vunpack.c.l.b16 %v186
    %v226 = vunpack.c.l.b16 %v187
    %v227 = vunpack.c.l.b16 %v188
    %v228 = vunpack.c.l.b16 %v189
    %v229 = vunpack.c.l.b16 %v190
    %v230 = vunpack.c.l.b16 %v191
    %v231 = vunpack.c.l.b16 %v192
    %v232 = vpack.c.b16 %v217, %v216
    %v233 = vpack.c.b16 %v219, %v218
    %v234 = vpack.c.b16 %v221, %v220
    %v235 = vpack.c.b16 %v223, %v222
    %v236 = vpack.c.b16 %v225, %v224
    %v237 = vpack.c.b16 %v227, %v226
    %v238 = vpack.c.b16 %v229, %v228
    %v239 = vpack.c.b16 %v231, %v230
    %248 = vmatprep.subr.bf16.mxu0 0
    %249 = vmatpush1.bf16.msra.mxu0 %v232
    %250 = vmatprep.subr.bf16.mxu0 0
    %251 = vmatpush1.bf16.msra.mxu0 %v233
    %252 = vmatprep.subr.bf16.mxu0 0
    %253 = vmatpush1.bf16.msra.mxu0 %v234
    %254 = vmatprep.subr.bf16.mxu0 0
    %255 = vmatpush1.bf16.msra.mxu0 %v235
    %256 = vmatprep.subr.bf16.mxu0 0
    %257 = vmatpush1.bf16.msra.mxu0 %v236
    %258 = vmatprep.subr.bf16.mxu0 0
    %259 = vmatpush1.bf16.msra.mxu0 %v237
    %260 = vmatprep.subr.bf16.mxu0 0
    %261 = vmatpush1.bf16.msra.mxu0 %v238
    %262 = vmatprep.subr.bf16.mxu0 0
    %263 = vmatpush1.bf16.msra.mxu0 %v239
    %264 = vmatprep.subr.bf16.mxu0 0
    %265 = vmatpush1.bf16.msra.mxu0 0
    %266 = vmatprep.subr.bf16.mxu0 0
    %267 = vmatpush1.bf16.msra.mxu0 0
    %268 = vmatprep.subr.bf16.mxu0 0
    %269 = vmatpush1.bf16.msra.mxu0 0
    %270 = vmatprep.subr.bf16.mxu0 0
    %271 = vmatpush1.bf16.msra.mxu0 0
    %272 = vmatprep.subr.bf16.mxu0 0
    %273 = vmatpush1.bf16.msra.mxu0 0
    %274 = vmatprep.subr.bf16.mxu0 0
    %275 = vmatpush1.bf16.msra.mxu0 0
    %276 = vmatprep.subr.bf16.mxu0 0
    %277 = vmatpush1.bf16.msra.mxu0 0
    %278 = vmatprep.subr.bf16.mxu0 0
    %279 = vmatpush1.bf16.msra.mxu0 0
    %280 = vmatprep.mubr.bf16.mxu0 0
    %281 = vmatmul.mubr.bf16.gmra.mrb[0].mxu0 %v176
    %v282 = vpop.f32.mrb[0].mxu0
    %v283 = vadd.f32 %v198, %v282
    %v284 = vpop.f32.mrb[0].mxu0
    %v285 = vpop.f32.mrb[0].mxu0
    %v286 = vpop.f32.mrb[0].mxu0
    %287 = vdwg.mxu0
    %v288 = vadd.f32 %v61, %v283
    %289 = vst [vmem:[#allocation8] sm:$0xff] %v288
    // Predicated region
    $region34: #{tpu_custom_call.1} parent=1 // pred_check
      _
    $region35: #{tpu_custom_call.1} parent=1 // pred_check_branch
      %291 = sbr.rel (0) target = $region37
    $region36: #{tpu_custom_call.1} parent=1 // pred_region
      %s293 = ssub.s32 128, 128
      %294 = vsyncadd [#allocation4], %s293
      %s296 = sshll.u32 [#allocation8], 4
      %s297 = int_to_ptr.vmem [resolvable:$true] %s296
      %299 = dma.vmem_to_hbm [thread:$0]  %s297, 128, %s5, [#allocation4]
    $region37: #{tpu_custom_call.1} parent=1 // pred_fallthru
      _
    // Predicated region
    $region38: #{tpu_custom_call.1} parent=1 // pred_check
      _
    $region39: #{tpu_custom_call.1} parent=1 // pred_check_branch
      %301 = sbr.rel (0) target = $region41
    $region40: #{tpu_custom_call.1} parent=1 // pred_region
      %302 = dma.done [#allocation4], 128
    $region41: #{tpu_custom_call.1} parent=1 // pred_fallthru
      _
    %303 = vsyncpa [#allocation3], 1
    %304 = vsyncpa [#allocation6], 1
    %305 = vsyncpa [#allocation4], 1

</llo_original>
